<compile_context>
chip_gen: v6e
topology: v6e:2x2x1
jax: 0.10.0
libtpu: 0.0.40
codegen_flags: <defaults>
</compile_context>

<pallas_src>
import functools

import numpy as np
import jax
import jax.numpy as jnp
from jax import lax
from jax.experimental import pallas as pl
from jax.experimental.pallas import tpu as pltpu

WALL_COT = 0.5
_SEG_LANES = 128       # segment-label axis padded to a full lane group
_HW_TILE_CAP = 32768   # upper bound on spatial tile (bounds the finalize fold)


def _round_up(x, m):
    return ((x + m - 1) // m) * m


def _vmem_capacity_bytes():
    """Per-TensorCore VMEM capacity; conservative fallback = v7x (64 MiB)."""
    try:
        cap = int(pltpu.get_tpu_info().vmem_capacity_bytes)
        if cap > 0:
            return cap
    except Exception:
        pass
    return 64 * 1024 * 1024


# --------------------------------------------------------------------------
# Kernel 1: masked recovery MSE, per-batch partials, HW-tiled.
# --------------------------------------------------------------------------
def _recov_kernel(pred_ref, inp_ref, mask_ref, out_ref, acc_sum, acc_cnt, *,
                  wall_cot, channels, tile):
    t = pl.program_id(1)

    @pl.when(t == 0)
    def _init():
        acc_sum[...] = jnp.zeros_like(acc_sum)
        acc_cnt[...] = jnp.zeros_like(acc_cnt)

    m = mask_ref[0]                 # (1, T) native dtype
    wall = m >= wall_cot            # (1, T) bool: target forced to zero here
    pos = m > 0                     # (1, T) bool: pixel participates

    # Fused per-8-channel chunk: load native dtype, cast, diff, square, mask,
    # accumulate — never materializes a full (C, T) f32 temporary.
    for c0 in range(0, channels, 8):
        r = min(8, channels - c0)
        p = pred_ref[0, c0:c0 + r, :].astype(jnp.float32)   # (r, T)
        x = inp_ref[0, c0:c0 + r, :].astype(jnp.float32)    # (r, T)
        d = jnp.where(wall, p, p - x)                        # (r, T)
        acc_sum[0:r, :] += jnp.where(pos, d * d, 0.0)        # (r, T)
    acc_cnt[...] += pos.astype(jnp.float32)                  # (1, T)

    # Fold lanes (vreg-aligned slices -> pure VPU adds) only at the last tile,
    # and emit a lane-dense (16, 128) per-(batch, split) partial block.
    @pl.when(t == pl.num_programs(1) - 1)
    def _finalize():
        s = acc_sum[:, 0:128]
        c = acc_cnt[:, 0:128]
        for k in range(1, tile // 128):
            s = s + acc_sum[:, k * 128:(k + 1) * 128]
            c = c + acc_cnt[:, k * 128:(k + 1) * 128]
        out_ref[0, 0:8, :] = s
        out_ref[0, 8:9, :] = c
        out_ref[0, 9:16, :] = jnp.zeros((7, 128), jnp.float32)


# --------------------------------------------------------------------------
# Kernel 2: per-(batch, segment) stats via one stacked MXU matmul per image.
# --------------------------------------------------------------------------
def _seg_stats_kernel(enc_ref, dec_ref, seg_ref, maski_ref, out_ref, lhs_scr, *,
                      bt, wall_cot):
    hwe = enc_ref.shape[-1]
    labels = lax.broadcasted_iota(jnp.int32, (_SEG_LANES, hwe), 0)   # hoisted

    for b in range(bt):
        e = enc_ref[b].astype(jnp.float32)        # (Ce, HWe)
        d = dec_ref[b].astype(jnp.float32)
        reco = jnp.mean((e - d) ** 2, axis=0, keepdims=True)          # (1, HWe)

        m = maski_ref[b].astype(jnp.float32)                          # (1, HWe)
        posm = jnp.logical_and(m > 0.0, m < wall_cot).astype(jnp.float32)

        # Stacked LHS built with plain row stores (no iota / nested wheres):
        # row0 -> counts, row1 -> summed reco error, row2 -> positive count.
        lhs_scr[0:1, :] = jnp.ones((1, hwe), jnp.float32)
        lhs_scr[1:2, :] = reco
        lhs_scr[2:3, :] = posm
        lhs_scr[3:8, :] = jnp.zeros((5, hwe), jnp.float32)

        sel = (seg_ref[b] == labels).astype(jnp.float32)              # (128, HWe)

        # TODO(synk): sel is consumed with its contraction on the minor dim
        # (B^T). If profiling shows Mosaic relayouting the one-hot, switch to
        # a (HWe,128)-oriented one-hot plus an HWe-tiled grid axis.
        out_ref[b] = lax.dot_general(                                  # (8, 128)
            lhs_scr[...], sel, (((1,), (1,)), ((), ())),
            preferred_element_type=jnp.float32)


# --------------------------------------------------------------------------
# Wrapper
# --------------------------------------------------------------------------
def confidence_loss_v2(pred, inputs, enc1, dec1, masks, segs,
                       wall_cot=WALL_COT, num_segs=4):
    """Returns loss_total = loss_recov + mean(reco_error of positive segments)."""
    B, C, H, W = inputs.shape
    _, Ce, He, We = enc1.shape
    HW = H * W
    HWe = He * We
    assert num_segs <= _SEG_LANES

    cap = _vmem_capacity_bytes()
    # generation-aware scoped-VMEM limit: ~54 MiB on v7x, ~100 MiB on v5e/v6e
    vmem_limit = min(int(cap * 0.85), 100 * 1024 * 1024)

    # nearest-neighbour downsample of segs / masks to the encoder resolution
    if H % He == 0 and W % We == 0:
        sh, sw = H // He, W // We
        seg_i = segs[:, 0].reshape(B, He, sh, We, sw)[:, :, 0, :, 0]
        mask_i = masks[:, 0].reshape(B, He, sh, We, sw)[:, :, 0, :, 0]
    else:
        hi = jnp.floor(jnp.arange(He) * (H / He)).astype(jnp.int32)
        wi = jnp.floor(jnp.arange(We) * (W / We)).astype(jnp.int32)
        seg_i = segs[:, 0][:, hi][:, :, wi]
        mask_i = masks[:, 0][:, hi][:, :, wi]

    # keep native dtypes — the kernels cast to f32 internally
    pred_r = pred.reshape(B, C, HW)
    inp_r = inputs.reshape(B, C, HW)
    mask_r = masks.reshape(B, 1, HW)

    # ---- kernel 1 sizing (generation-aware, VMEM-budget derived) ----
    NSPLIT = 2 if (B % 2) else 1        # odd/1-batch: split space across 2 cores
    isz = pred.dtype.itemsize
    # per lane of T: pred+inp double-buffered + mask/scratch/live f32 temps
    lane_bytes = 4 * C * isz + 256
    budget1 = int(cap * 0.60)
    t_budget = max(128, (budget1 // lane_bytes) // 128 * 128)
    chunk = _round_up(-(-HW // NSPLIT), 128)
    T = min(_HW_TILE_CAP, t_budget, chunk)
    chunk = _round_up(chunk, T)
    NT = chunk // T
    HWp = chunk * NSPLIT

    pad = HWp - HW
    if pad:  # padded pixels get mask=0 -> excluded from sum and count
        pred_r = jnp.pad(pred_r, ((0, 0), (0, 0), (0, pad)))
        inp_r = jnp.pad(inp_r, ((0, 0), (0, 0), (0, pad)))
        mask_r = jnp.pad(mask_r, ((0, 0), (0, 0), (0, pad)))

    if NSPLIT == 1:
        in_idx = lambda b, t: (b, 0, t)
    else:
        in_idx = lambda bs, t: (bs // NSPLIT, 0, (bs % NSPLIT) * NT + t)

    recov = pl.pallas_call(
        functools.partial(_recov_kernel, wall_cot=wall_cot, channels=C, tile=T),
        out_shape=jax.ShapeDtypeStruct((B * NSPLIT, 16, 128), jnp.float32),
        grid_spec=pltpu.PrefetchScalarGridSpec(
            num_scalar_prefetch=0,
            grid=(B * NSPLIT, NT),
            in_specs=[pl.BlockSpec((1, C, T), in_idx),
                      pl.BlockSpec((1, C, T), in_idx),
                      pl.BlockSpec((1, 1, T), in_idx)],
            out_specs=pl.BlockSpec((1, 16, 128), lambda bs, t: (bs, 0, 0)),
            scratch_shapes=[pltpu.VMEM((8, T), jnp.float32),
                            pltpu.VMEM((1, T), jnp.float32)]),
        compiler_params=pltpu.CompilerParams(
            dimension_semantics=("parallel", "arbitrary"),
            vmem_limit_bytes=vmem_limit),
    )(pred_r, inp_r, mask_r)

    recov_sum = jnp.sum(recov[:, 0:8, :])
    recov_cnt = jnp.sum(recov[:, 8, :])

    # ---- Kernel 2: per-(batch, segment-label) statistics ----
    enc_r = enc1.reshape(B, Ce, HWe)
    dec_r = dec1.reshape(B, Ce, HWe)
    seg_r = seg_i.reshape(B, 1, HWe).astype(jnp.int32)
    maski_r = mask_i.reshape(B, 1, HWe)

    # VMEM accounting per live image: enc+dec double-buffered inputs, seg/mask
    # blocks (8-sublane padded) double-buffered, in-kernel one-hot + f32 casts.
    esz = enc1.dtype.itemsize
    per_img = HWe * (4 * Ce * esz          # enc + dec, x2 buffers
                     + 4 * 8 * 4           # seg + mask blocks, x2 buffers
                     + _SEG_LANES * 4      # one-hot sel (f32)
                     + 4 * Ce * 4          # f32 casts + squared-diff temps
                     + 8 * 4)              # lhs rows / reco / posm temps
    budget2 = int(cap * 0.55)
    Bt = max(1, min(max(1, B // 2),        # >=2 grid steps for megacore/pipeline
                    8,
                    budget2 // max(per_img, 1)))
    while B % Bt:
        Bt -= 1
    # TODO(synk): for very large HWe add a second grid axis over HWe tiles with
    # a pl.when-accumulated output instead of one full-HWe block per step.

    stats = pl.pallas_call(
        functools.partial(_seg_stats_kernel, bt=Bt, wall_cot=wall_cot),
        out_shape=jax.ShapeDtypeStruct((B, 8, _SEG_LANES), jnp.float32),
        grid_spec=pltpu.PrefetchScalarGridSpec(
            num_scalar_prefetch=0,
            grid=(B // Bt,),
            in_specs=[pl.BlockSpec((Bt, Ce, HWe), lambda g: (g, 0, 0)),
                      pl.BlockSpec((Bt, Ce, HWe), lambda g: (g, 0, 0)),
                      pl.BlockSpec((Bt, 1, HWe), lambda g: (g, 0, 0)),
                      pl.BlockSpec((Bt, 1, HWe), lambda g: (g, 0, 0))],
            out_specs=pl.BlockSpec((Bt, 8, _SEG_LANES), lambda g: (g, 0, 0)),
            scratch_shapes=[pltpu.VMEM((8, HWe), jnp.float32)]),
        compiler_params=pltpu.CompilerParams(
            dimension_semantics=("parallel",),
            vmem_limit_bytes=vmem_limit),
    )(enc_r, dec_r, seg_r, maski_r)

    # all 128 label lanes; absent labels have count 0 and are filtered below
    cnt_s = stats[:, 0, :]    # (B, 128) pixel count per label
    err_s = stats[:, 1, :]    # (B, 128) summed reco error per label
    pos_s = stats[:, 2, :]    # (B, 128) "positive" pixel count per label

    # glue: groups covering >= 1% of the map; positives > 1% of the group
    valid = (cnt_s / float(HWe)) >= 0.01
    cnt_safe = jnp.maximum(cnt_s, 1.0)
    mean_err = err_s / cnt_safe
    positive = jnp.logical_and(valid, (pos_s / cnt_safe) > 0.01)
    pos_f = positive.astype(jnp.float32)
    # NOTE: like the PyTorch reference, this yields NaN if no pixel has mask>0
    # or if no segment passes the positivity filter (documented precondition).
    flat_pos_mean = jnp.sum(mean_err * pos_f) / jnp.sum(pos_f)
    loss_recov = recov_sum / recov_cnt
    return loss_recov + flat_pos_mean


# --------------------------------------------------------------------------
# Reference + test
# --------------------------------------------------------------------------
def _reference_loss(pred, inputs, enc1, dec1, masks, segs, wall_cot, He, We):
    """Pure-numpy transcription of the PyTorch forward (non-plot path)."""
    pred, inputs, enc1, dec1, masks, segs = (
        np.asarray(a, np.float32) for a in (pred, inputs, enc1, dec1, masks, segs))
    B, C, H, W = inputs.shape
    hi = np.floor(np.arange(He) * (H / He)).astype(int)
    wi = np.floor(np.arange(We) * (W / We)).astype(int)
    seg_i = segs[:, 0][:, hi][:, :, wi]
    mask_i = masks[:, 0][:, hi][:, :, wi]
    reco = ((enc1 - dec1) ** 2).mean(axis=1)
    batch_map, pos_flags = [], []
    for h in range(B):
        uniq, counts = np.unique(seg_i[h], return_counts=True)
        for v in range(len(uniq)):
            if counts[v] / (He * We) < 0.01:
                continue
            sel = seg_i[h] == uniq[v]
            pos = np.sum((mask_i[h] < wall_cot) & (mask_i[h] > 0) & sel)
            batch_map.append(reco[h][sel].mean())
            pos_flags.append(pos / counts[v] > 0.01)
    batch_map = np.array(batch_map, np.float32)
    pos_flags = np.array(pos_flags, bool)
    flat_pos = batch_map[pos_flags]
    targets = np.where(masks >= wall_cot, np.float32(0.0), inputs)
    mse = ((pred - targets) ** 2).sum(axis=1, keepdims=True)
    loss_recov = mse[masks > 0].mean()
    return np.float32(loss_recov + flat_pos.mean())


def _make_case(key, B, C, H, W, Ce, He, We, num_segs):
    k = jax.random.split(key, 6)
    inputs = jax.random.normal(k[0], (B, C, H, W), jnp.float32)
    pred = jax.random.normal(k[1], (B, C, H, W), jnp.float32)
    enc1 = jax.random.normal(k[2], (B, Ce, He, We), jnp.float32)
    dec1 = enc1 + 0.1 * jax.random.normal(k[3], (B, Ce, He, We), jnp.float32)
    masks = jax.random.uniform(k[4], (B, 1, H, W), jnp.float32)        # in (0, 1)
    segs = jax.random.randint(k[5], (B, 1, H, W), 0, num_segs).astype(jnp.float32)
    return pred, inputs, enc1, dec1, masks, segs


if __name__ == "__main__":
    NUM_SEGS = 4
    key = jax.random.PRNGKey(0)
    k_even, k_odd = jax.random.split(key)

    # case 1: even batch (grid parallel over B)
    args = _make_case(k_even, B=2, C=4, H=16, W=16, Ce=8, He=8, We=8,
                      num_segs=NUM_SEGS)
    loss = jax.block_until_ready(
        confidence_loss_v2(*args, wall_cot=WALL_COT, num_segs=NUM_SEGS))
    ref = _reference_loss(*args, WALL_COT, 8, 8)
    assert np.isfinite(float(loss))
    np.testing.assert_allclose(float(loss), float(ref), rtol=1e-4, atol=1e-5)

    # case 2: odd batch (exercises the 2-way spatial split for megacore)
    args1 = _make_case(k_odd, B=1, C=4, H=16, W=16, Ce=8, He=8, We=8,
                       num_segs=NUM_SEGS)
    loss1 = jax.block_until_ready(
        confidence_loss_v2(*args1, wall_cot=WALL_COT, num_segs=NUM_SEGS))
    ref1 = _reference_loss(*args1, WALL_COT, 8, 8)
    assert np.isfinite(float(loss1))
    np.testing.assert_allclose(float(loss1), float(ref1), rtol=1e-4, atol=1e-5)

    print("KERNEL_OK")
</pallas_src>

<mosaic_0001>
module attributes {stable_mosaic.version = 11 : i64} {
  func.func @_recov_kernel(%arg0: i32, %arg1: i32, %arg2: memref<1x4x256xf32, #tpu.memory_space<vmem>>, %arg3: memref<1x4x256xf32, #tpu.memory_space<vmem>>, %arg4: memref<1x1x256xf32, #tpu.memory_space<vmem>>, %arg5: memref<1x16x128xf32, #tpu.memory_space<vmem>>, %arg6: memref<8x256xf32, #tpu.memory_space<vmem>>, %arg7: memref<1x256xf32, #tpu.memory_space<vmem>>) attributes {dimension_semantics = [#tpu.dimension_semantics<parallel>, #tpu.dimension_semantics<arbitrary>], iteration_bounds = array<i64: 2, 1>, scalar_prefetch = 0 : i64, scratch_operands = 2 : i64, tpu.core_type = #tpu.core_type<tc>, window_params = [{transform_indices = @transform_0, window_bounds = array<i64: 1, 4, 256>}, {transform_indices = @transform_1, window_bounds = array<i64: 1, 4, 256>}, {transform_indices = @transform_2, window_bounds = array<i64: 1, 1, 256>}, {transform_indices = @transform_3, window_bounds = array<i64: 1, 16, 128>}]} {
    %c0_i32 = arith.constant 0 : i32
    %0 = arith.cmpi eq, %arg1, %c0_i32 : i32
    %1 = arith.extui %0 : i1 to i32
    %c0_i32_0 = arith.constant 0 : i32
    %2 = arith.cmpi ne, %1, %c0_i32_0 : i32
    scf.if %2 {
      %cst_21 = arith.constant 0.000000e+00 : f32
      %33 = vector.broadcast %cst_21 : f32 to vector<8x256xf32>
      %c0_22 = arith.constant 0 : index
      %c0_23 = arith.constant 0 : index
      %34 = vector.load %arg6[%c0_22, %c0_23] : memref<8x256xf32, #tpu.memory_space<vmem>>, vector<8x256xf32>
      tpu.vector_store %arg6[%c0_22, %c0_23], %33 {strides = array<i32>} : memref<8x256xf32, #tpu.memory_space<vmem>>, vector<8x256xf32>,
      %cst_24 = arith.constant 0.000000e+00 : f32
      %35 = vector.broadcast %cst_24 : f32 to vector<1x256xf32>
      %c0_25 = arith.constant 0 : index
      %c0_26 = arith.constant 0 : index
      %36 = vector.load %arg7[%c0_25, %c0_26] : memref<1x256xf32, #tpu.memory_space<vmem>>, vector<1x256xf32>
      tpu.vector_store %arg7[%c0_25, %c0_26], %35 {strides = array<i32>} : memref<1x256xf32, #tpu.memory_space<vmem>>, vector<1x256xf32>,
    } else {
    }
    %c0 = arith.constant 0 : index
    %c0_1 = arith.constant 0 : index
    %c0_2 = arith.constant 0 : index
    %3 = vector.load %arg4[%c0, %c0_1, %c0_2] : memref<1x1x256xf32, #tpu.memory_space<vmem>>, vector<1x1x256xf32>
    %4 = vector.shape_cast %3 : vector<1x1x256xf32> to vector<1x256xf32>
    %cst = arith.constant 5.000000e-01 : f32
    %5 = vector.broadcast %cst : f32 to vector<1x256xf32>
    %6 = arith.cmpf oge, %4, %5 : vector<1x256xf32>
    %cst_3 = arith.constant 0.000000e+00 : f32
    %7 = vector.broadcast %cst_3 : f32 to vector<1x256xf32>
    %8 = arith.cmpf ogt, %4, %7 : vector<1x256xf32>
    %c0_4 = arith.constant 0 : index
    %c0_5 = arith.constant 0 : index
    %c0_6 = arith.constant 0 : index
    %9 = vector.load %arg2[%c0_4, %c0_5, %c0_6] : memref<1x4x256xf32, #tpu.memory_space<vmem>>, vector<1x4x256xf32>
    %10 = vector.shape_cast %9 : vector<1x4x256xf32> to vector<4x256xf32>
    %c0_7 = arith.constant 0 : index
    %c0_8 = arith.constant 0 : index
    %c0_9 = arith.constant 0 : index
    %11 = vector.load %arg3[%c0_7, %c0_8, %c0_9] : memref<1x4x256xf32, #tpu.memory_space<vmem>>, vector<1x4x256xf32>
    %12 = vector.shape_cast %11 : vector<1x4x256xf32> to vector<4x256xf32>
    %13 = arith.subf %10, %12 : vector<4x256xf32>
    %14 = vector.shape_cast %6 : vector<1x256xi1> to vector<1x256xi1>
    %15 = vector.broadcast %14 : vector<1x256xi1> to vector<4x256xi1>
    %16 = arith.select %15, %10, %13 : vector<4x256xi1>, vector<4x256xf32>
    %c0_10 = arith.constant 0 : index
    %c0_11 = arith.constant 0 : index
    %17 = vector.load %arg6[%c0_10, %c0_11] : memref<8x256xf32, #tpu.memory_space<vmem>>, vector<4x256xf32>
    %18 = arith.mulf %16, %16 : vector<4x256xf32>
    %cst_12 = arith.constant 0.000000e+00 : f32
    %19 = vector.shape_cast %8 : vector<1x256xi1> to vector<1x256xi1>
    %20 = vector.broadcast %19 : vector<1x256xi1> to vector<4x256xi1>
    %21 = vector.broadcast %cst_12 : f32 to vector<4x256xf32>
    %22 = arith.select %20, %18, %21 : vector<4x256xi1>, vector<4x256xf32>
    %23 = arith.addf %17, %22 : vector<4x256xf32>
    %c0_13 = arith.constant 0 : index
    %c0_14 = arith.constant 0 : index
    %24 = vector.load %arg6[%c0_13, %c0_14] : memref<8x256xf32, #tpu.memory_space<vmem>>, vector<4x256xf32>
    tpu.vector_store %arg6[%c0_13, %c0_14], %23 {strides = array<i32>} : memref<8x256xf32, #tpu.memory_space<vmem>>, vector<4x256xf32>,
    %c0_15 = arith.constant 0 : index
    %c0_16 = arith.constant 0 : index
    %25 = vector.load %arg7[%c0_15, %c0_16] : memref<1x256xf32, #tpu.memory_space<vmem>>, vector<1x256xf32>
    %26 = arith.extui %8 : vector<1x256xi1> to vector<1x256xi32>
    %27 = arith.sitofp %26 : vector<1x256xi32> to vector<1x256xf32>
    %28 = arith.addf %25, %27 : vector<1x256xf32>
    %c0_17 = arith.constant 0 : index
    %c0_18 = arith.constant 0 : index
    %29 = vector.load %arg7[%c0_17, %c0_18] : memref<1x256xf32, #tpu.memory_space<vmem>>, vector<1x256xf32>
    tpu.vector_store %arg7[%c0_17, %c0_18], %28 {strides = array<i32>} : memref<1x256xf32, #tpu.memory_space<vmem>>, vector<1x256xf32>,
    %c0_i32_19 = arith.constant 0 : i32
    %30 = arith.cmpi eq, %arg1, %c0_i32_19 : i32
    %31 = arith.extui %30 : i1 to i32
    %c0_i32_20 = arith.constant 0 : i32
    %32 = arith.cmpi ne, %31, %c0_i32_20 : i32
    scf.if %32 {
      %c0_21 = arith.constant 0 : index
      %c0_22 = arith.constant 0 : index
      %33 = vector.load %arg6[%c0_21, %c0_22] : memref<8x256xf32, #tpu.memory_space<vmem>>, vector<8x128xf32>
      %c0_23 = arith.constant 0 : index
      %c0_24 = arith.constant 0 : index
      %34 = vector.load %arg7[%c0_23, %c0_24] : memref<1x256xf32, #tpu.memory_space<vmem>>, vector<1x128xf32>
      %c0_25 = arith.constant 0 : index
      %c128 = arith.constant 128 : index
      %35 = vector.load %arg6[%c0_25, %c128] : memref<8x256xf32, #tpu.memory_space<vmem>>, vector<8x128xf32>
      %36 = arith.addf %33, %35 : vector<8x128xf32>
      %c0_26 = arith.constant 0 : index
      %c128_27 = arith.constant 128 : index
      %37 = vector.load %arg7[%c0_26, %c128_27] : memref<1x256xf32, #tpu.memory_space<vmem>>, vector<1x128xf32>
      %38 = arith.addf %34, %37 : vector<1x128xf32>
      %c0_28 = arith.constant 0 : index
      %c0_29 = arith.constant 0 : index
      %c0_30 = arith.constant 0 : index
      %39 = vector.load %arg5[%c0_28, %c0_29, %c0_30] : memref<1x16x128xf32, #tpu.memory_space<vmem>>, vector<1x8x128xf32>
      %40 = vector.shape_cast %39 : vector<1x8x128xf32> to vector<8x128xf32>
      %41 = vector.shape_cast %36 : vector<8x128xf32> to vector<1x8x128xf32>
      tpu.vector_store %arg5[%c0_28, %c0_29, %c0_30], %41 {strides = array<i32>} : memref<1x16x128xf32, #tpu.memory_space<vmem>>, vector<1x8x128xf32>,
      %c0_31 = arith.constant 0 : index
      %c8 = arith.constant 8 : index
      %c0_32 = arith.constant 0 : index
      %42 = vector.load %arg5[%c0_31, %c8, %c0_32] : memref<1x16x128xf32, #tpu.memory_space<vmem>>, vector<1x1x128xf32>
      %43 = vector.shape_cast %42 : vector<1x1x128xf32> to vector<1x128xf32>
      %44 = vector.shape_cast %38 : vector<1x128xf32> to vector<1x1x128xf32>
      tpu.vector_store %arg5[%c0_31, %c8, %c0_32], %44 {strides = array<i32>} : memref<1x16x128xf32, #tpu.memory_space<vmem>>, vector<1x1x128xf32>,
      %cst_33 = arith.constant 0.000000e+00 : f32
      %45 = vector.broadcast %cst_33 : f32 to vector<7x128xf32>
      %c0_34 = arith.constant 0 : index
      %c9 = arith.constant 9 : index
      %c0_35 = arith.constant 0 : index
      %46 = vector.load %arg5[%c0_34, %c9, %c0_35] : memref<1x16x128xf32, #tpu.memory_space<vmem>>, vector<1x7x128xf32>
      %47 = vector.shape_cast %46 : vector<1x7x128xf32> to vector<7x128xf32>
      %48 = vector.shape_cast %45 : vector<7x128xf32> to vector<1x7x128xf32>
      tpu.vector_store %arg5[%c0_34, %c9, %c0_35], %48 {strides = array<i32>} : memref<1x16x128xf32, #tpu.memory_space<vmem>>, vector<1x7x128xf32>,
    } else {
    }
    return
  }
  func.func @transform_0(%arg0: i32, %arg1: i32) -> (i32, i32, i32) {
    %c0_i32 = arith.constant 0 : i32
    %c0_i32_0 = arith.constant 0 : i32
    return %arg0, %c0_i32, %arg1 : i32, i32, i32
  }
  func.func @transform_1(%arg0: i32, %arg1: i32) -> (i32, i32, i32) {
    %c0_i32 = arith.constant 0 : i32
    %c0_i32_0 = arith.constant 0 : i32
    return %arg0, %c0_i32, %arg1 : i32, i32, i32
  }
  func.func @transform_2(%arg0: i32, %arg1: i32) -> (i32, i32, i32) {
    %c0_i32 = arith.constant 0 : i32
    %c0_i32_0 = arith.constant 0 : i32
    return %arg0, %c0_i32, %arg1 : i32, i32, i32
  }
  func.func @transform_3(%arg0: i32, %arg1: i32) -> (i32, i32, i32) {
    %c0_i32 = arith.constant 0 : i32
    %c0_i32_0 = arith.constant 0 : i32
    %c0_i32_1 = arith.constant 0 : i32
    return %arg0, %c0_i32, %c0_i32_0 : i32, i32, i32
  }
}

</mosaic_0001>

<llo_original>
// kernel: tpu_custom_call.1
$region0: #{tpu_custom_call.1}
  #allocation0 [shape = 'u32[]', space=smem, size = 0x4, offset = 0x4, fixed_abs, tag = 'smem constant byte address 0x4 - core index']
  #allocation1 [shape = 'u32[144,128]{1,0:T(1,128)}', space=vmem, size = 0x12000, scoped, tag = 'internal scratch']
  #allocation2 [shape = 'f32[8,256]{1,0:T(8,128)}', space=vmem, size = 0x2000, scoped, tag = 'scratch operand']
  #allocation3 [shape = 'f32[1,256]{1,0:T(1,128)}', space=vmem, size = 0x400, scoped, tag = 'scratch operand']
  %s0 = inlined_call_operand.hbm [shape: f32[2,4,256], index: 0, kind: input, shape index: {}]
  %s1 = inlined_call_operand.hbm [shape: f32[2,4,256], index: 1, kind: input, shape index: {}]
  %s2 = inlined_call_operand.hbm [shape: f32[2,1,256], index: 2, kind: input, shape index: {}]
  %s3 = inlined_call_operand.hbm [shape: f32[2,16,128], index: 3, kind: output, shape index: {}]
  %s4 = sld [smem:[#allocation0]]
  $region65: #{tpu_custom_call.1} parent=0
    _
  %s6 = ssub.s32 1, %s4
  %s7 = scalar_select 0, %s6, %s4
  $region1: #{tpu_custom_call.1} parent=0
    #allocation4 [shape = 'u8[8192]{0}', space=vmem, size = 0x2000, scoped, tag = 'input window, operand 0']
    #allocation5 [shape = 's32[2]{0}', space=sflag, size = 0x8, scoped, tag = 'scoped memory for tpu_custom_call.1']
    #allocation6 [shape = 's32[2]{0}', space=sflag, size = 0x8, scoped, tag = 'scoped memory for tpu_custom_call.1']
    #allocation7 [shape = 'u8[8192]{0}', space=vmem, size = 0x2000, scoped, tag = 'input window, operand 1']
    #allocation8 [shape = 's32[2]{0}', space=sflag, size = 0x8, scoped, tag = 'scoped memory for tpu_custom_call.1']
    #allocation9 [shape = 'u8[2048]{0}', space=vmem, size = 0x800, scoped, tag = 'input window, operand 2']
    #allocation10 [shape = 'u8[16384]{0}', space=vmem, size = 0x4000, scoped, tag = 'output window, operand 0']
    %8 = vsyncpa [#allocation5], 0
    %s9 = scalar_lea.sflag [#allocation5], 1
    %10 = vsyncpa %s9, 0
    %11 = vsyncpa [#allocation8], 0
    %s12 = scalar_lea.sflag [#allocation8], 1
    %13 = vsyncpa %s12, 0
    %14 = vsyncpa [#allocation6], 0
    %s15 = scalar_lea.sflag [#allocation6], 1
    %16 = vsyncpa %s15, 0
    loop: start=0, step=1, limit=4
    $region2: #{tpu_custom_call.1} parent=1 // loop_pre_header
      _
    $region3: #{tpu_custom_call.1} parent=1 // loop_header
      %s18 = sphi 0, %s22
      %p19 = scmp.ge.s32.totalorder %s18, 4
      %s25 = sphi 0, %s37
      %s26 = sphi 0, %s33
      %s27 = sphi 0, %s25
      %s28 = sphi 0, %s26
      %s29 = sphi 0, %s27
      %s30 = sphi 0, %s28
      %s42 = sphi 0, %s44
      %s45 = sphi 0, %s42
      %s46 = sphi 0, %s45
      %s62 = sphi 0, %s46
      %s70 = sphi 0, %s72
      %s73 = sphi 0, %s70
      %s74 = sphi 0, %s73
      %s90 = sphi 0, %s74
      %s98 = sphi 0, %s100
      %s101 = sphi 0, %s98
      %s102 = sphi 0, %s101
      %s118 = sphi 0, %s102
      %s124 = sphi 0, %s126
      %s127 = sphi 0, %s124
      %s128 = sphi 0, %s127
      %s144 = sphi 0, %s128
    $region4: #{tpu_custom_call.1} parent=1 // loop_header_branch
      %21 = sbr.rel (%p19) target = $region8
    $region5: #{tpu_custom_call.1} parent=1 // loop_body
      %s23 = ssub.s32 %s18, 1
      %s24 = ssub.s32 %s18, 2
      %s31 = sadd.s32 1, %s26
      %p32 = scmp.ge.s32.totalorder %s31, 1
      %s33 = scalar_select %p32, 0, %s31
      %s34 = sadd.s32 1, %s25
      %s35 = scalar_select %p32, %s34, %s25
      %p36 = scmp.ge.s32.totalorder %s35, 2
      %s37 = scalar_select %p36, 0, %s35
      %s38 = ssub.s32 %s25, %s37
      %s39 = ssub.s32 %s26, %s33
      %s40 = sor.u32 %s38, %s39
      %p41 = scmp.eq.s32.totalorder %s40, 0
      %s43 = sadd.s32 %s42, 1
      %s44 = scalar_select %p41, %s42, %s43
      %p47 = pneg %p41
      %p48 = scmp.eq.s32.totalorder %s18, 1
      %p49 = por %p47, %p48
      %p50 = scmp.ne.s32.totalorder %s42, %s45
      %p51 = scmp.eq.s32.totalorder %s18, 0
      %p52 = por %p50, %p51
      %p53 = scmp.ne.s32.totalorder %s42, %s45
      %p54 = scmp.eq.s32.totalorder %s23, 1
      %p55 = por %p53, %p54
      %p56 = scmp.ne.s32.totalorder %s45, %s46
      %p57 = scmp.eq.s32.totalorder %s23, 0
      %p58 = por %p56, %p57
      %p59 = scmp.ne.s32.totalorder %s45, %s46
      %p60 = scmp.eq.s32.totalorder %s24, 1
      %p61 = por %p59, %p60
      %p63 = scmp.ne.s32.totalorder %s46, %s62
      %p64 = scmp.eq.s32.totalorder %s24, 0
      %p65 = por %p63, %p64
      %s66 = ssub.s32 %s25, %s37
      %s67 = ssub.s32 %s26, %s33
      %s68 = sor.u32 %s66, %s67
      %p69 = scmp.eq.s32.totalorder %s68, 0
      %s71 = sadd.s32 %s70, 1
      %s72 = scalar_select %p69, %s70, %s71
      %p75 = pneg %p69
      %p76 = scmp.eq.s32.totalorder %s18, 1
      %p77 = por %p75, %p76
      %p78 = scmp.ne.s32.totalorder %s70, %s73
      %p79 = scmp.eq.s32.totalorder %s18, 0
      %p80 = por %p78, %p79
      %p81 = scmp.ne.s32.totalorder %s70, %s73
      %p82 = scmp.eq.s32.totalorder %s23, 1
      %p83 = por %p81, %p82
      %p84 = scmp.ne.s32.totalorder %s73, %s74
      %p85 = scmp.eq.s32.totalorder %s23, 0
      %p86 = por %p84, %p85
      %p87 = scmp.ne.s32.totalorder %s73, %s74
      %p88 = scmp.eq.s32.totalorder %s24, 1
      %p89 = por %p87, %p88
      %p91 = scmp.ne.s32.totalorder %s74, %s90
      %p92 = scmp.eq.s32.totalorder %s24, 0
      %p93 = por %p91, %p92
      %s94 = ssub.s32 %s25, %s37
      %s95 = ssub.s32 %s26, %s33
      %s96 = sor.u32 %s94, %s95
      %p97 = scmp.eq.s32.totalorder %s96, 0
      %s99 = sadd.s32 %s98, 1
      %s100 = scalar_select %p97, %s98, %s99
      %p103 = pneg %p97
      %p104 = scmp.eq.s32.totalorder %s18, 1
      %p105 = por %p103, %p104
      %p106 = scmp.ne.s32.totalorder %s98, %s101
      %p107 = scmp.eq.s32.totalorder %s18, 0
      %p108 = por %p106, %p107
      %p109 = scmp.ne.s32.totalorder %s98, %s101
      %p110 = scmp.eq.s32.totalorder %s23, 1
      %p111 = por %p109, %p110
      %p112 = scmp.ne.s32.totalorder %s101, %s102
      %p113 = scmp.eq.s32.totalorder %s23, 0
      %p114 = por %p112, %p113
      %p115 = scmp.ne.s32.totalorder %s101, %s102
      %p116 = scmp.eq.s32.totalorder %s24, 1
      %p117 = por %p115, %p116
      %p119 = scmp.ne.s32.totalorder %s102, %s118
      %p120 = scmp.eq.s32.totalorder %s24, 0
      %p121 = por %p119, %p120
      %s122 = ssub.s32 %s25, %s37
      %p123 = scmp.eq.s32.totalorder %s122, 0
      %s125 = sadd.s32 %s124, 1
      %s126 = scalar_select %p123, %s124, %s125
      %p129 = pneg %p123
      %p130 = scmp.eq.s32.totalorder %s18, 1
      %p131 = por %p129, %p130
      %p132 = scmp.ne.s32.totalorder %s124, %s127
      %p133 = scmp.eq.s32.totalorder %s18, 0
      %p134 = por %p132, %p133
      %p135 = scmp.ne.s32.totalorder %s124, %s127
      %p136 = scmp.eq.s32.totalorder %s23, 1
      %p137 = por %p135, %p136
      %p138 = scmp.ne.s32.totalorder %s127, %s128
      %p139 = scmp.eq.s32.totalorder %s23, 0
      %p140 = por %p138, %p139
      %p141 = scmp.ne.s32.totalorder %s127, %s128
      %p142 = scmp.eq.s32.totalorder %s24, 1
      %p143 = por %p141, %p142
      %p145 = scmp.ne.s32.totalorder %s128, %s144
      %p146 = scmp.eq.s32.totalorder %s24, 0
      %p147 = por %p145, %p146
      %p148 = scmp.le.s32.totalorder 1, %s18
      %p149 = scmp.lt.s32.totalorder %s18, 3
      %p150 = pnand %p148, %p149
      %p151 = pneg %p150
      // Predicated region
      $region9: #{tpu_custom_call.1} parent=5 // pred_check
        _
      $region10: #{tpu_custom_call.1} parent=5 // pred_check_branch
        %153 = sbr.rel (%p150) target = $region12
      $region11: #{tpu_custom_call.1} parent=5 // pred_region
        %s154 = ssub.s32 %s18, 1
      $region12: #{tpu_custom_call.1} parent=5 // pred_fallthru
        _
      %p155 = scmp.lt.s32.totalorder %s18, 2
      // Predicated region
      $region13: #{tpu_custom_call.1} parent=5 // pred_check
        %p156 = pneg %p155
      $region14: #{tpu_custom_call.1} parent=5 // pred_check_branch
        %158 = sbr.rel (%p156) target = $region16
      $region15: #{tpu_custom_call.1} parent=5 // pred_region
        // Predicated region
        $region17: #{tpu_custom_call.1} parent=15 // pred_check
          %p159 = pneg %p52
        $region18: #{tpu_custom_call.1} parent=15 // pred_check_branch
          %161 = sbr.rel (%p159) target = $region20
        $region19: #{tpu_custom_call.1} parent=15 // pred_region
          %s162 = sand.u32 %s42, 1
          %s163 = scalar_lea.sflag [#allocation5], %s162
          %s164 = sand.u32 %s42, 1
          %s165 = smul.addr %s164, 8
          %s166 = scalar_lea.vmem [#allocation4], %s165
          %s167 = smul.u32 2, %s26
          %s169 = ssub.s32 128, 128
          %170 = vsyncadd %s163, %s169
          %s171 = smul.addr %s25, 2
          %s172 = sadd.s32 %s167, %s171
          %s173 = smul.addr %s172, 64
          %s174 = scalar_lea.hbm %s0, %s173
          %s176 = sshll.u32 %s166, 4
          %s177 = int_to_ptr.vmem [resolvable:$true] %s176
          %179 = dma.hbm_to_vmem [thread:$0]  %s174, 128, %s177, %s163
        $region20: #{tpu_custom_call.1} parent=15 // pred_fallthru
          _
        // Predicated region
        $region21: #{tpu_custom_call.1} parent=15 // pred_check
          %p180 = pneg %p80
        $region22: #{tpu_custom_call.1} parent=15 // pred_check_branch
          %182 = sbr.rel (%p180) target = $region24
        $region23: #{tpu_custom_call.1} parent=15 // pred_region
          %s183 = sand.u32 %s18, 1
          %s184 = scalar_lea.sflag [#allocation8], %s183
          %s185 = sand.u32 %s70, 1
          %s186 = smul.addr %s185, 8
          %s187 = scalar_lea.vmem [#allocation7], %s186
          %s188 = smul.u32 2, %s26
          %s190 = ssub.s32 128, 128
          %191 = vsyncadd %s184, %s190
          %s192 = smul.addr %s25, 2
          %s193 = sadd.s32 %s188, %s192
          %s194 = smul.addr %s193, 64
          %s195 = scalar_lea.hbm %s1, %s194
          %s197 = sshll.u32 %s187, 4
          %s198 = int_to_ptr.vmem [resolvable:$true] %s197
          %200 = dma.hbm_to_vmem [thread:$0]  %s195, 128, %s198, %s184
        $region24: #{tpu_custom_call.1} parent=15 // pred_fallthru
          _
        // Predicated region
        $region25: #{tpu_custom_call.1} parent=15 // pred_check
          %p201 = pneg %p108
        $region26: #{tpu_custom_call.1} parent=15 // pred_check_branch
          %203 = sbr.rel (%p201) target = $region28
        $region27: #{tpu_custom_call.1} parent=15 // pred_region
          %s204 = sand.u32 %s18, 1
          %s205 = scalar_lea.sflag [#allocation8], %s204
          %s206 = sand.u32 %s98, 1
          %s207 = smul.addr %s206, 2
          %s208 = scalar_lea.vmem [#allocation9], %s207
          %s209 = smul.u32 2, %s26
          %s211 = ssub.s32 32, 32
          %212 = vsyncadd %s205, %s211
          %s213 = smul.addr %s25, 2
          %s214 = sadd.s32 %s209, %s213
          %s215 = smul.addr %s214, 16
          %s216 = scalar_lea.hbm %s2, %s215
          %s218 = sshll.u32 %s208, 4
          %s219 = int_to_ptr.vmem [resolvable:$true] %s218
          %221 = dma.hbm_to_vmem [thread:$0]  %s216, 32, %s219, %s205
        $region28: #{tpu_custom_call.1} parent=15 // pred_fallthru
          _
      $region16: #{tpu_custom_call.1} parent=5 // pred_fallthru
        _
      %p222 = scmp.le.s32.totalorder 1, %s18
      %p223 = scmp.lt.s32.totalorder %s18, 3
      %p224 = pnand %p222, %p223
      %p225 = pneg %p224
      // Predicated region
      $region29: #{tpu_custom_call.1} parent=5 // pred_check
        _
      $region30: #{tpu_custom_call.1} parent=5 // pred_check_branch
        %227 = sbr.rel (%p224) target = $region32
      $region31: #{tpu_custom_call.1} parent=5 // pred_region
        %s228 = ssub.s32 %s18, 1
        %s229 = sand.u32 %s45, 1
        %s230 = scalar_lea.sflag [#allocation5], %s229
        %s231 = sand.u32 %s45, 1
        %s232 = smul.addr %s231, 8
        %s233 = scalar_lea.vmem [#allocation4], %s232
        // Predicated region
        $region33: #{tpu_custom_call.1} parent=31 // pred_check
          %p234 = pneg %p58
        $region34: #{tpu_custom_call.1} parent=31 // pred_check_branch
          %236 = sbr.rel (%p234) target = $region36
        $region35: #{tpu_custom_call.1} parent=31 // pred_region
          %237 = dma.done %s230, 128
        $region36: #{tpu_custom_call.1} parent=31 // pred_fallthru
          _
        %s238 = sand.u32 %s23, 1
        %s239 = scalar_lea.sflag [#allocation8], %s238
        %s240 = sand.u32 %s73, 1
        %s241 = smul.addr %s240, 8
        %s242 = scalar_lea.vmem [#allocation7], %s241
        // Predicated region
        $region37: #{tpu_custom_call.1} parent=31 // pred_check
          %p243 = pneg %p86
        $region38: #{tpu_custom_call.1} parent=31 // pred_check_branch
          %245 = sbr.rel (%p243) target = $region40
        $region39: #{tpu_custom_call.1} parent=31 // pred_region
          %246 = dma.done %s239, 128
        $region40: #{tpu_custom_call.1} parent=31 // pred_fallthru
          _
        %s247 = sand.u32 %s23, 1
        %s248 = scalar_lea.sflag [#allocation8], %s247
        %s249 = sand.u32 %s101, 1
        %s250 = smul.addr %s249, 2
        %s251 = scalar_lea.vmem [#allocation9], %s250
        // Predicated region
        $region41: #{tpu_custom_call.1} parent=31 // pred_check
          %p252 = pneg %p114
        $region42: #{tpu_custom_call.1} parent=31 // pred_check_branch
          %254 = sbr.rel (%p252) target = $region44
        $region43: #{tpu_custom_call.1} parent=31 // pred_region
          %255 = dma.done %s248, 32
        $region44: #{tpu_custom_call.1} parent=31 // pred_fallthru
          _
        %s256 = sand.u32 %s45, 1
        %s257 = scalar_lea.sflag [#allocation5], %s256
        %s258 = sand.u32 %s45, 1
        %s259 = smul.addr %s258, 8
        %s260 = scalar_lea.vmem [#allocation4], %s259
        %p261 = pneg %p58
        %p262 = pneg %p55
        %s263 = sand.u32 %s23, 1
        %s264 = scalar_lea.sflag [#allocation8], %s263
        %s265 = sand.u32 %s73, 1
        %s266 = smul.addr %s265, 8
        %s267 = scalar_lea.vmem [#allocation7], %s266
        %p268 = pneg %p86
        %p269 = pneg %p83
        %s270 = sand.u32 %s23, 1
        %s271 = scalar_lea.sflag [#allocation8], %s270
        %s272 = sand.u32 %s101, 1
        %s273 = smul.addr %s272, 2
        %s274 = scalar_lea.vmem [#allocation9], %s273
        %p275 = pneg %p114
        %p276 = pneg %p111
        %p277 = pneg %p140
        %p278 = pneg %p137
        %s279 = sand.u32 %s127, 1
        %s280 = scalar_lea.sflag [#allocation6], %s279
        %s281 = sand.u32 %s127, 1
        %s282 = smul.addr %s281, 16
        %s283 = scalar_lea.vmem [#allocation10], %s282
        %s284 = smul.u32 2, %s28
        %s285 = smul.u32 2, %s28
        %s286 = smul.u32 2, %s28
        %p287 = scmp.eq.s32.totalorder %s28, 0
        // Predicated region
        $region45: #{tpu_custom_call.1} parent=31 // pred_check
          %p288 = pneg %p287
        $region46: #{tpu_custom_call.1} parent=31 // pred_check_branch
          %290 = sbr.rel (%p288) target = $region48
        $region47: #{tpu_custom_call.1} parent=31 // pred_region
          %291 = vst [vmem:[#allocation2] sm:$0xff] 0.0
          %292 = vst [vmem:[#allocation2 + $0x8] sm:$0xff] 0.0
          %v293 = vlaneseq
          %vm294 = vcmp.ge.s32.totalorder %v293, 0
          %vm295 = vcmp.lt.s32.totalorder %v293, 256
          %vm296 = vmand %vm294, %vm295
          %297 = vst.msk [vmem:[#allocation3] sm:$0x3] %vm296, 0.0
        $region48: #{tpu_custom_call.1} parent=31 // pred_fallthru
          _
        %v298 = vld [vmem:[%s251] sm:$0x3]
        %vm299 = vcmp.ge.f32.partialorder %v298, 0.5
        %vm300 = vcmp.gt.f32.partialorder %v298, 0.0
        %v301 = vld [vmem:[%s233] sm:$0xff]
        %v302 = vld [vmem:[%s242] sm:$0xff]
        %v303 = vsub.f32 %v301, %v302
        %v304 = vsel %vm299, 1, 0
        %v305 = vlaneseq
        %v306 = vshrl.u32 %v305, 7
        %v307 = vsub.s32 0, %v306
        %v308 = vrot.slane %v304, %v307
        %v309 = vlaneseq
        %v310 = vshrl.u32 %v309, 7
        %v311 = vsub.s32 1, %v310
        %v312 = vrot.slane %v304, %v311
        %vm313 = vcmp.eq.s32.totalorder %v308, 1
        %vm314 = vcmp.eq.s32.totalorder %v312, 1
        %v316 = vcombine.high %v301, %v301
        %v319 = vcombine.high %v303, %v303
        %v321 = vsel %vm313, %v301, %v303
        %v322 = vsel %vm314, %v316, %v319
        %v323 = vld [vmem:[#allocation2] sm:$0xf]
        %v324 = vld [vmem:[#allocation2 + $0x8] sm:$0xf]
        %v325 = vmul.f32 %v321, %v321
        %v326 = vmul.f32 %v322, %v322
        %v327 = vsel %vm300, 1, 0
        %v328 = vlaneseq
        %v329 = vshrl.u32 %v328, 7
        %v330 = vsub.s32 0, %v329
        %v331 = vrot.slane %v327, %v330
        %v332 = vlaneseq
        %v333 = vshrl.u32 %v332, 7
        %v334 = vsub.s32 1, %v333
        %v335 = vrot.slane %v327, %v334
        %vm336 = vcmp.eq.s32.totalorder %v331, 1
        %vm337 = vcmp.eq.s32.totalorder %v335, 1
        %v338 = vsel %vm336, %v325, 0.0
        %v339 = vsel %vm337, %v326, 0.0
        %v340 = vadd.f32 %v323, %v338
        %v341 = vadd.f32 %v324, %v339
        %342 = vst [vmem:[#allocation2] sm:$0xf] %v340
        %343 = vst [vmem:[#allocation2 + $0x8] sm:$0xf] %v341
        %v344 = vld [vmem:[#allocation3] sm:$0x3]
        %v345 = vcvt.s32.f32 %v327
        %v346 = vadd.f32 %v344, %v345
        %v347 = vlaneseq
        %vm348 = vcmp.ge.s32.totalorder %v347, 0
        %vm349 = vcmp.lt.s32.totalorder %v347, 256
        %vm350 = vmand %vm348, %vm349
        %351 = vst.msk [vmem:[#allocation3] sm:$0x3] %vm350, %v346
        // Predicated region
        $region49: #{tpu_custom_call.1} parent=31 // pred_check
          %p352 = pneg %p287
        $region50: #{tpu_custom_call.1} parent=31 // pred_check_branch
          %354 = sbr.rel (%p352) target = $region52
        $region51: #{tpu_custom_call.1} parent=31 // pred_region
          %v355 = vld [vmem:[#allocation2] sm:$0xff]
          %v356 = vld [vmem:[#allocation3] sm:$0x1]
          %v357 = vld [vmem:[#allocation2 + $0x8] sm:$0xff]
          %v358 = vadd.f32 %v355, %v357
          %v359 = vld [vmem:[#allocation3 + $0x1] sm:$0x1]
          %v360 = vadd.f32 %v356, %v359
          %361 = vst [vmem:[%s283] sm:$0xff] %v358
          %362 = vst [vmem:[%s283 + $0x8] sm:$0x1] %v360
          %363 = vst [vmem:[%s283 + $0x9] sm:$0x7f] 0.0
        $region52: #{tpu_custom_call.1} parent=31 // pred_fallthru
          _
        %s364 = sand.u32 %s127, 1
        %s365 = scalar_lea.sflag [#allocation6], %s364
        %s366 = sand.u32 %s127, 1
        %s367 = smul.addr %s366, 16
        %s368 = scalar_lea.vmem [#allocation10], %s367
        // Predicated region
        $region53: #{tpu_custom_call.1} parent=31 // pred_check
          %p369 = pneg %p137
        $region54: #{tpu_custom_call.1} parent=31 // pred_check_branch
          %371 = sbr.rel (%p369) target = $region56
        $region55: #{tpu_custom_call.1} parent=31 // pred_region
          %s373 = ssub.s32 256, 256
          %374 = vsyncadd %s365, %s373
          %s375 = smul.addr %s27, 2
          %s376 = smul.addr %s375, 128
          %s377 = scalar_lea.hbm %s3, %s376
          %s378 = sshll.u32 %s368, 4
          %s379 = int_to_ptr.vmem [resolvable:$true] %s378
          %384 = dma.vmem_to_hbm [thread:$0]  %s379, 256, %s377, %s365, 128, 128, 8
        $region56: #{tpu_custom_call.1} parent=31 // pred_fallthru
          _
      $region32: #{tpu_custom_call.1} parent=5 // pred_fallthru
        _
      %p385 = scmp.le.s32.totalorder 2, %s18
      // Predicated region
      $region57: #{tpu_custom_call.1} parent=5 // pred_check
        %p386 = pneg %p385
      $region58: #{tpu_custom_call.1} parent=5 // pred_check_branch
        %388 = sbr.rel (%p386) target = $region60
      $region59: #{tpu_custom_call.1} parent=5 // pred_region
        %s389 = ssub.s32 %s18, 2
        // Predicated region
        $region61: #{tpu_custom_call.1} parent=59 // pred_check
          %p390 = pneg %p143
        $region62: #{tpu_custom_call.1} parent=59 // pred_check_branch
          %392 = sbr.rel (%p390) target = $region64
        $region63: #{tpu_custom_call.1} parent=59 // pred_region
          %s393 = sand.u32 %s128, 1
          %s394 = scalar_lea.sflag [#allocation6], %s393
          %s395 = sand.u32 %s128, 1
          %s396 = smul.addr %s395, 16
          %s397 = scalar_lea.vmem [#allocation10], %s396
          %398 = dma.done %s394, 256
        $region64: #{tpu_custom_call.1} parent=59 // pred_fallthru
          _
      $region60: #{tpu_custom_call.1} parent=5 // pred_fallthru
        _
    $region6: #{tpu_custom_call.1} parent=1 // loop_footer
      %s22 = sadd.s32 1, %s18
    $region7: #{tpu_custom_call.1} parent=1 // loop_footer_branch
      %17 = sbr.rel target = $region3
    $region8: #{tpu_custom_call.1} parent=1 // loop_exit
      _
    %399 = vsyncpa [#allocation5], 1
    %s400 = scalar_lea.sflag [#allocation5], 1
    %401 = vsyncpa %s400, 1
    %402 = vsyncpa [#allocation8], 1
    %s403 = scalar_lea.sflag [#allocation8], 1
    %404 = vsyncpa %s403, 1
    %405 = vsyncpa [#allocation6], 1
    %s406 = scalar_lea.sflag [#allocation6], 1
    %407 = vsyncpa %s406, 1

</llo_original>
